<compile_context>
chip_gen: v5e
topology: v5e:2x2
jax: 0.10.0
libtpu: 0.0.40
codegen_flags: <defaults>
</compile_context>

<pallas_src>
import math

import jax
import jax.numpy as jnp
from jax.experimental import pallas as pl
from jax.experimental.pallas import tpu as pltpu  # noqa: F401  (TPU backend)

LANES = 128          # lane width of every weight slab / hidden activation
ROWS = 8             # sublane padding of the "batch" (only row 0 is meaningful)
NUM_LOSSES = 3

# Packed-parameter layout: W1/W2/W3/W4 stacked along sublanes in one
# (144, 128) f32 buffer.  Per layer: rows [off, off+fan_in) hold w.T, the row
# at index fan_in holds the bias plus the constant-1 carrier for the next
# layer, remaining rows up to the padded contraction width K are zero.
L1_OFF, L1_K = 0,   8     # fan_in 3  (+1 carrier), padded to 8
L2_OFF, L2_K = 8,   72    # fan_in 64 (+1 carrier), padded to 72
L3_OFF, L3_K = 80,  40    # fan_in 32 (+1 carrier), padded to 40
L4_OFF, L4_K = 120, 24    # fan_in 16 (+1 carrier), padded to 24
W_ROWS = 144
NEG_BIG = -1e9            # baked into padded output lanes of the last layer


def _meta_mlp_kernel(x_ref, w_ref, out_ref):
    x = x_ref[...]                                    # (8, 8): row 0 = [f, d, b, 1, 0, 0, 0, 0]

    h = jnp.dot(x, w_ref[L1_OFF:L1_OFF + L1_K, :],
                preferred_element_type=jnp.float32)   # (8, 128)
    h = jnp.maximum(h, 0.0)                           # carrier lane: ReLU(1) = 1

    h = jnp.dot(h[:, :L2_K], w_ref[L2_OFF:L2_OFF + L2_K, :],
                preferred_element_type=jnp.float32)
    h = jnp.maximum(h, 0.0)

    h = jnp.dot(h[:, :L3_K], w_ref[L3_OFF:L3_OFF + L3_K, :],
                preferred_element_type=jnp.float32)
    h = jnp.maximum(h, 0.0)

    logits = jnp.dot(h[:, :L4_K], w_ref[L4_OFF:L4_OFF + L4_K, :],
                     preferred_element_type=jnp.float32)   # (8, 128)

    # Softmax on the single meaningful row.  Padded lanes hold -1e9 (baked via
    # the bias/carrier row of W4), so exp() underflows them to exactly 0.
    row = logits[0:1, :]                              # (1, 128)
    m = jnp.max(row, axis=-1, keepdims=True)
    e = jnp.exp(row - m)
    s = jnp.sum(e, axis=-1, keepdims=True)
    out_ref[...] = e / s


def pack_meta_params(params):
    """One-time packing of the 4 (weight, bias) pairs (PyTorch (out,in)/(out,)
    layout) into a single pre-padded (144, 128) f32 buffer with biases folded
    in via a constant-1 carrier lane.  Call once at init and reuse."""
    (w1, b1), (w2, b2), (w3, b3), (w4, b4) = params
    buf = jnp.zeros((W_ROWS, LANES), jnp.float32)

    # layer 1: 3 -> 64, carrier out at lane 64
    buf = buf.at[L1_OFF:L1_OFF + 3, 0:64].set(w1.T)
    buf = buf.at[L1_OFF + 3, 0:64].set(b1)
    buf = buf.at[L1_OFF + 3, 64].set(1.0)
    # layer 2: 64 -> 32, carrier in at lane 64, carrier out at lane 32
    buf = buf.at[L2_OFF:L2_OFF + 64, 0:32].set(w2.T)
    buf = buf.at[L2_OFF + 64, 0:32].set(b2)
    buf = buf.at[L2_OFF + 64, 32].set(1.0)
    # layer 3: 32 -> 16, carrier in at lane 32, carrier out at lane 16
    buf = buf.at[L3_OFF:L3_OFF + 32, 0:16].set(w3.T)
    buf = buf.at[L3_OFF + 32, 0:16].set(b3)
    buf = buf.at[L3_OFF + 32, 16].set(1.0)
    # layer 4: 16 -> 3, carrier in at lane 16; padded output lanes baked to -1e9
    buf = buf.at[L4_OFF:L4_OFF + 16, 0:NUM_LOSSES].set(w4.T)
    buf = buf.at[L4_OFF + 16, 0:NUM_LOSSES].set(b4)
    buf = buf.at[L4_OFF + 16, NUM_LOSSES:].set(NEG_BIG)
    return buf


@jax.jit
def _meta_forward_jit(loss_vec, packed_w):
    # input slab: row 0 = [focal, dice, boundary, 1 (bias carrier), 0, 0, 0, 0]
    x = jnp.zeros((ROWS, L1_K), jnp.float32)
    x = x.at[0, :NUM_LOSSES].set(loss_vec)
    x = x.at[0, NUM_LOSSES].set(1.0)

    out = pl.pallas_call(
        _meta_mlp_kernel,
        out_shape=jax.ShapeDtypeStruct((1, LANES), jnp.float32),
        in_specs=[pl.BlockSpec((ROWS, L1_K), lambda: (0, 0)),
                  pl.BlockSpec((W_ROWS, LANES), lambda: (0, 0))],
        out_specs=pl.BlockSpec((1, LANES), lambda: (0, 0)),
    )(x, packed_w)
    return out[0, :NUM_LOSSES]


def meta_learning_forward(loss_components, packed_params):
    """Pallas equivalent of MetaLearningModule.forward.

    loss_components: dict with 'focal_loss', 'dice_loss', 'boundary_loss'.
    packed_params:   result of pack_meta_params (pre-padded, cached).
    Returns adaptation_weights: (3,) f32, softmax-normalized.
    """
    loss_vec = jnp.asarray([loss_components.get('focal_loss', 0.0),
                            loss_components.get('dice_loss', 0.0),
                            loss_components.get('boundary_loss', 0.0)], jnp.float32)
    return _meta_forward_jit(loss_vec, packed_params)


def init_meta_network_params(key):
    """Deterministic init mimicking torch.nn.Linear default (U[-1/sqrt(fan_in), +])."""
    dims = [(3, 64), (64, 32), (32, 16), (16, 3)]
    params = []
    for (fan_in, fan_out) in dims:
        key, kw, kb = jax.random.split(key, 3)
        bound = 1.0 / math.sqrt(fan_in)
        w = jax.random.uniform(kw, (fan_out, fan_in), jnp.float32, -bound, bound)
        b = jax.random.uniform(kb, (fan_out,), jnp.float32, -bound, bound)
        params.append((w, b))
    return params


def _reference_forward(loss_components, params):
    """Plain-JAX reference for validation."""
    x = jnp.asarray([loss_components.get('focal_loss', 0.0),
                     loss_components.get('dice_loss', 0.0),
                     loss_components.get('boundary_loss', 0.0)], jnp.float32)
    for i, (w, b) in enumerate(params):
        x = x @ w.T + b
        if i < len(params) - 1:
            x = jnp.maximum(x, 0.0)
    return jax.nn.softmax(x, axis=0)


# TODO(synk): meta_update / Adam optimizer state and get_adaptation_strategy are
# host-side training logic, not part of forward; they are not kernelized here.

if __name__ == "__main__":
    key = jax.random.PRNGKey(0)
    params = init_meta_network_params(key)

    # One-time packing (hoisted out of the per-call path).
    packed = jax.block_until_ready(pack_meta_params(params))

    loss_components = {
        'focal_loss': 0.73,
        'dice_loss': 0.41,
        'boundary_loss': 1.25,
    }

    weights = meta_learning_forward(loss_components, packed)
    weights = jax.block_until_ready(weights)

    ref = _reference_forward(loss_components, params)
    assert weights.shape == (3,)
    assert jnp.allclose(weights, ref, atol=1e-5, rtol=1e-5), (weights, ref)
    assert jnp.allclose(jnp.sum(weights), 1.0, atol=1e-5)

    print("KERNEL_OK")
</pallas_src>

<mosaic_0001>
module attributes {stable_mosaic.version = 11 : i64} {
  func.func @_meta_mlp_kernel(%arg0: memref<8x8xf32, #tpu.memory_space<vmem>>, %arg1: memref<144x128xf32, #tpu.memory_space<vmem>>, %arg2: memref<1x128xf32, #tpu.memory_space<vmem>>) attributes {dimension_semantics = [], scalar_prefetch = 0 : i64, scratch_operands = 0 : i64, tpu.core_type = #tpu.core_type<tc>} {
    %c0 = arith.constant 0 : index
    %c0_0 = arith.constant 0 : index
    %0 = vector.load %arg0[%c0, %c0_0] : memref<8x8xf32, #tpu.memory_space<vmem>>, vector<8x8xf32>
    %c0_1 = arith.constant 0 : index
    %c0_2 = arith.constant 0 : index
    %1 = vector.load %arg1[%c0_1, %c0_2] : memref<144x128xf32, #tpu.memory_space<vmem>>, vector<8x128xf32>
    %cst = arith.constant dense<0.000000e+00> : vector<8x128xf32>
    %2 = tpu.matmul %0, %1, %cst {dimension_numbers = #tpu.dot_dimension_numbers<[1], [0], [0], [1], [0, 0, 1, 1], [], []>} : vector<8x8xf32>, vector<8x128xf32>, vector<8x128xf32> -> vector<8x128xf32>
    %cst_3 = arith.constant 0.000000e+00 : f32
    %3 = vector.broadcast %cst_3 : f32 to vector<8x128xf32>
    %4 = arith.maximumf %2, %3 : vector<8x128xf32>
    %5 = vector.extract_strided_slice %4 {offsets = [0, 0], sizes = [8, 72], strides = [1, 1]} : vector<8x128xf32> to vector<8x72xf32>
    %c8 = arith.constant 8 : index
    %c0_4 = arith.constant 0 : index
    %6 = vector.load %arg1[%c8, %c0_4] : memref<144x128xf32, #tpu.memory_space<vmem>>, vector<72x128xf32>
    %cst_5 = arith.constant dense<0.000000e+00> : vector<8x128xf32>
    %7 = tpu.matmul %5, %6, %cst_5 {dimension_numbers = #tpu.dot_dimension_numbers<[1], [0], [0], [1], [0, 0, 1, 1], [], []>} : vector<8x72xf32>, vector<72x128xf32>, vector<8x128xf32> -> vector<8x128xf32>
    %cst_6 = arith.constant 0.000000e+00 : f32
    %8 = vector.broadcast %cst_6 : f32 to vector<8x128xf32>
    %9 = arith.maximumf %7, %8 : vector<8x128xf32>
    %10 = vector.extract_strided_slice %9 {offsets = [0, 0], sizes = [8, 40], strides = [1, 1]} : vector<8x128xf32> to vector<8x40xf32>
    %c80 = arith.constant 80 : index
    %c0_7 = arith.constant 0 : index
    %11 = vector.load %arg1[%c80, %c0_7] : memref<144x128xf32, #tpu.memory_space<vmem>>, vector<40x128xf32>
    %cst_8 = arith.constant dense<0.000000e+00> : vector<8x128xf32>
    %12 = tpu.matmul %10, %11, %cst_8 {dimension_numbers = #tpu.dot_dimension_numbers<[1], [0], [0], [1], [0, 0, 1, 1], [], []>} : vector<8x40xf32>, vector<40x128xf32>, vector<8x128xf32> -> vector<8x128xf32>
    %cst_9 = arith.constant 0.000000e+00 : f32
    %13 = vector.broadcast %cst_9 : f32 to vector<8x128xf32>
    %14 = arith.maximumf %12, %13 : vector<8x128xf32>
    %15 = vector.extract_strided_slice %14 {offsets = [0, 0], sizes = [8, 24], strides = [1, 1]} : vector<8x128xf32> to vector<8x24xf32>
    %c120 = arith.constant 120 : index
    %c0_10 = arith.constant 0 : index
    %16 = vector.load %arg1[%c120, %c0_10] : memref<144x128xf32, #tpu.memory_space<vmem>>, vector<24x128xf32>
    %cst_11 = arith.constant dense<0.000000e+00> : vector<8x128xf32>
    %17 = tpu.matmul %15, %16, %cst_11 {dimension_numbers = #tpu.dot_dimension_numbers<[1], [0], [0], [1], [0, 0, 1, 1], [], []>} : vector<8x24xf32>, vector<24x128xf32>, vector<8x128xf32> -> vector<8x128xf32>
    %18 = vector.extract_strided_slice %17 {offsets = [0, 0], sizes = [1, 128], strides = [1, 1]} : vector<8x128xf32> to vector<1x128xf32>
    %cst_12 = arith.constant dense<0xFF800000> : vector<1xf32>
    %19 = vector.multi_reduction <maximumf>, %18, %cst_12 [1] : vector<1x128xf32> to vector<1xf32>
    %20 = vector.shape_cast %19 : vector<1xf32> to vector<1x1xf32>
    %21 = vector.broadcast %20 : vector<1x1xf32> to vector<1x128xf32>
    %22 = arith.subf %18, %21 : vector<1x128xf32>
    %23 = math.exp %22 : vector<1x128xf32>
    %cst_13 = arith.constant dense<0.000000e+00> : vector<1xf32>
    %24 = vector.multi_reduction <add>, %23, %cst_13 [1] : vector<1x128xf32> to vector<1xf32>
    %25 = vector.shape_cast %24 : vector<1xf32> to vector<1x1xf32>
    %26 = vector.broadcast %25 : vector<1x1xf32> to vector<1x128xf32>
    %27 = arith.divf %23, %26 : vector<1x128xf32>
    %c0_14 = arith.constant 0 : index
    %c0_15 = arith.constant 0 : index
    %28 = vector.load %arg2[%c0_14, %c0_15] : memref<1x128xf32, #tpu.memory_space<vmem>>, vector<1x128xf32>
    tpu.vector_store %arg2[%c0_14, %c0_15], %27 {strides = array<i32>} : memref<1x128xf32, #tpu.memory_space<vmem>>, vector<1x128xf32>,
    return
  }
}

</mosaic_0001>

<llo_original>
// kernel: _meta_forward_jit.1
$region0: #{_meta_forward_jit.1}
  #allocation0 [shape = 'u32[]', space=smem, size = 0x4, offset = 0x4, fixed_abs, tag = 'smem constant byte address 0x4 - core index']
  #allocation1 [shape = 'u32[72,128]{1,0:T(1,128)}', space=vmem, size = 0x9000, scoped, tag = 'internal scratch']
  %s0 = inlined_call_operand.vmem [shape: f32[8,8], index: 0, kind: input, shape index: {}]
  %s1 = inlined_call_operand.hbm [shape: f32[144,128], index: 1, kind: input, shape index: {}]
  %s2 = inlined_call_operand.vmem [shape: f32[1,128], index: 2, kind: output, shape index: {}]
  %s3 = sld [smem:[#allocation0]]
  $region22: #{_meta_forward_jit.1} parent=0
    _
  %s5 = ssub.s32 1, %s3
  %s6 = scalar_select 0, %s5, %s3
  $region1: #{_meta_forward_jit.1} parent=0
    #allocation2 [shape = 'u8[73728]{0}', space=vmem, size = 0x12000, scoped, tag = 'input window, operand 1, single buffered']
    #allocation3 [shape = 's32[1]{0}', space=sflag, size = 0x4, scoped, tag = 'scoped memory for _meta_forward_jit.1']
    %7 = vsyncpa [#allocation3], 0
    // Predicated region
    $region2: #{_meta_forward_jit.1} parent=1 // pred_check
      _
    $region3: #{_meta_forward_jit.1} parent=1 // pred_check_branch
      %9 = sbr.rel (0) target = $region5
    $region4: #{_meta_forward_jit.1} parent=1 // pred_region
      _
    $region5: #{_meta_forward_jit.1} parent=1 // pred_fallthru
      _
    // Predicated region
    $region6: #{_meta_forward_jit.1} parent=1 // pred_check
      _
    $region7: #{_meta_forward_jit.1} parent=1 // pred_check_branch
      %11 = sbr.rel (0) target = $region9
    $region8: #{_meta_forward_jit.1} parent=1 // pred_region
      %13 = vsyncadd [#allocation3], 0
      %s14 = sshll.u32 %s1, 4
      %s15 = int_to_ptr.hbm [resolvable:$true] %s14
      %s16 = sshll.u32 [#allocation2], 4
      %s17 = int_to_ptr.vmem [resolvable:$true] %s16
      %22 = dma.hbm_to_vmem [thread:$0]  %s15, 2304, %s17, [#allocation3], 128, 128, 8
    $region9: #{_meta_forward_jit.1} parent=1 // pred_fallthru
      _
    // Predicated region
    $region10: #{_meta_forward_jit.1} parent=1 // pred_check
      _
    $region11: #{_meta_forward_jit.1} parent=1 // pred_check_branch
      %24 = sbr.rel (0) target = $region13
    $region12: #{_meta_forward_jit.1} parent=1 // pred_region
      %26 = dma.done [#allocation3], 2304
    $region13: #{_meta_forward_jit.1} parent=1 // pred_fallthru
      _
    %v27 = vld [vmem:[%s0] sm:$0xff]
    %v28 = vld [vmem:[#allocation2] sm:$0xff]
    %vm29 = vcmask 64512
    %v31 = vsel %vm29, %v27, 0
    %33 = vmatpush.msra.mxu0 0.0
    %34 = vmatpush.msra.mxu0 0.0
    %35 = vmatpush.msra.mxu0 0.0
    %36 = vmatpush.msra.mxu0 0.0
    %37 = vmatpush.msra.mxu0 0.0
    %38 = vmatpush.msra.mxu0 0.0
    %39 = vmatpush.msra.mxu0 0.0
    %40 = vmatpush.msra.mxu0 0.0
    %41 = vmatpush.msra.mxu0 0.0
    %42 = vmatpush.msra.mxu0 0.0
    %43 = vmatpush.msra.mxu0 0.0
    %44 = vmatpush.msra.mxu0 0.0
    %45 = vmatpush.msra.mxu0 0.0
    %46 = vmatpush.msra.mxu0 0.0
    %47 = vmatpush.msra.mxu0 0.0
    %48 = vmatpush.msra.mxu0 %v28
    %49 = vmatmul.f32.gmra.mxu0 %v31
    %v50 = vpop.f32.mrf.mxu0
    %v51 = vadd.f32 0.0, %v50
    %52 = vdwg.mxu0
    %v53 = vmax.f32 %v51, 0.0
    %v54 = vld [vmem:[#allocation2 + $0x8] sm:$0xff]
    %v55 = vld [vmem:[#allocation2 + $0x10] sm:$0xff]
    %v56 = vld [vmem:[#allocation2 + $0x18] sm:$0xff]
    %v57 = vld [vmem:[#allocation2 + $0x20] sm:$0xff]
    %v58 = vld [vmem:[#allocation2 + $0x28] sm:$0xff]
    %v59 = vld [vmem:[#allocation2 + $0x30] sm:$0xff]
    %v60 = vld [vmem:[#allocation2 + $0x38] sm:$0xff]
    %v61 = vld [vmem:[#allocation2 + $0x40] sm:$0xff]
    %v62 = vld [vmem:[#allocation2 + $0x48] sm:$0xff]
    %vm63 = vcmask 588800
    %v65 = vsel %vm63, %v53, 0
    %67 = vmatpush.msra.mxu0 0.0
    %68 = vmatpush.msra.mxu0 0.0
    %69 = vmatpush.msra.mxu0 0.0
    %70 = vmatpush.msra.mxu0 0.0
    %71 = vmatpush.msra.mxu0 0.0
    %72 = vmatpush.msra.mxu0 0.0
    %73 = vmatpush.msra.mxu0 0.0
    %74 = vmatpush.msra.mxu0 %v62
    %75 = vmatpush.msra.mxu0 %v61
    %76 = vmatpush.msra.mxu0 %v60
    %77 = vmatpush.msra.mxu0 %v59
    %78 = vmatpush.msra.mxu0 %v58
    %79 = vmatpush.msra.mxu0 %v57
    %80 = vmatpush.msra.mxu0 %v56
    %81 = vmatpush.msra.mxu0 %v55
    %82 = vmatpush.msra.mxu0 %v54
    %83 = vmatmul.f32.gmra.mxu0 %v65
    %v84 = vpop.f32.mrf.mxu0
    %v85 = vadd.f32 0.0, %v84
    %86 = vdwg.mxu0
    %v87 = vmax.f32 %v85, 0.0
    %v88 = vld [vmem:[#allocation2 + $0x50] sm:$0xff]
    %v89 = vld [vmem:[#allocation2 + $0x58] sm:$0xff]
    %v90 = vld [vmem:[#allocation2 + $0x60] sm:$0xff]
    %v91 = vld [vmem:[#allocation2 + $0x68] sm:$0xff]
    %v92 = vld [vmem:[#allocation2 + $0x70] sm:$0xff]
    %vm93 = vcmask 326656
    %v95 = vsel %vm93, %v87, 0
    %97 = vmatpush.msra.mxu0 0.0
    %98 = vmatpush.msra.mxu0 0.0
    %99 = vmatpush.msra.mxu0 0.0
    %100 = vmatpush.msra.mxu0 0.0
    %101 = vmatpush.msra.mxu0 0.0
    %102 = vmatpush.msra.mxu0 0.0
    %103 = vmatpush.msra.mxu0 0.0
    %104 = vmatpush.msra.mxu0 0.0
    %105 = vmatpush.msra.mxu0 0.0
    %106 = vmatpush.msra.mxu0 0.0
    %107 = vmatpush.msra.mxu0 0.0
    %108 = vmatpush.msra.mxu0 %v92
    %109 = vmatpush.msra.mxu0 %v91
    %110 = vmatpush.msra.mxu0 %v90
    %111 = vmatpush.msra.mxu0 %v89
    %112 = vmatpush.msra.mxu0 %v88
    %113 = vmatmul.f32.gmra.mxu0 %v95
    %v114 = vpop.f32.mrf.mxu0
    %v115 = vadd.f32 0.0, %v114
    %116 = vdwg.mxu0
    %v117 = vmax.f32 %v115, 0.0
    %v118 = vld [vmem:[#allocation2 + $0x78] sm:$0xff]
    %v119 = vld [vmem:[#allocation2 + $0x80] sm:$0xff]
    %v120 = vld [vmem:[#allocation2 + $0x88] sm:$0xff]
    %vm121 = vcmask 195584
    %v123 = vsel %vm121, %v117, 0
    %125 = vmatpush.msra.mxu0 0.0
    %126 = vmatpush.msra.mxu0 0.0
    %127 = vmatpush.msra.mxu0 0.0
    %128 = vmatpush.msra.mxu0 0.0
    %129 = vmatpush.msra.mxu0 0.0
    %130 = vmatpush.msra.mxu0 0.0
    %131 = vmatpush.msra.mxu0 0.0
    %132 = vmatpush.msra.mxu0 0.0
    %133 = vmatpush.msra.mxu0 0.0
    %134 = vmatpush.msra.mxu0 0.0
    %135 = vmatpush.msra.mxu0 0.0
    %136 = vmatpush.msra.mxu0 0.0
    %137 = vmatpush.msra.mxu0 0.0
    %138 = vmatpush.msra.mxu0 %v120
    %139 = vmatpush.msra.mxu0 %v119
    %140 = vmatpush.msra.mxu0 %v118
    %141 = vmatmul.f32.gmra.mxu0 %v123
    %v142 = vpop.f32.mrf.mxu0
    %v143 = vadd.f32 0.0, %v142
    %144 = vdwg.mxu0
    %vm145 = vcmask 1040384
    %v146 = vsel %vm145, %v143, -inf
    %147 = vmax.xlane.f32.xlu0 %v146
    %v148 = vpop.xlane.xlu0 %147
    %v149 = vsub.f32 %v143, %v148
    %v150 = vmul.f32 %v149, 1.442695
    %v151 = vpow.pop %v150
    %v152 = vsel %vm145, %v151, 0.0
    %153 = vadd.xlane.f32.xlu0 %v152
    %v154 = vpop.xlane.xlu0 %153
    %v155 = vrcp.pop %v154
    %v156 = vmul.f32 %v154, %v155
    %v157 = vsub.f32 1.0, %v156
    %v158 = vmul.f32 %v155, %v157
    %v159 = vadd.f32 %v155, %v158
    %vm160 = vweird.f32 %v154
    %vm161 = vweird.f32 %v155
    %vm162 = vmor %vm160, %vm161
    %v163 = vsel %vm162, %v155, %v159
    %v164 = vand.u32 2147483647, %v154
    %vm165 = vcmp.eq.f32.partialorder %v164, 8.507059e+37
    %v166 = vand.u32 %v154, 2147483648
    %v167 = vor.u32 1.1754944e-38, %v166
    %v168 = vsel %vm165, %v167, %v163
    %v169 = vmul.f32 %v151, %v168
    %170 = vst [vmem:[%s2] sm:$0x1] %v169
    // Predicated region
    $region14: #{_meta_forward_jit.1} parent=1 // pred_check
      _
    $region15: #{_meta_forward_jit.1} parent=1 // pred_check_branch
      %172 = sbr.rel (0) target = $region17
    $region16: #{_meta_forward_jit.1} parent=1 // pred_region
      _
    $region17: #{_meta_forward_jit.1} parent=1 // pred_fallthru
      _
    // Predicated region
    $region18: #{_meta_forward_jit.1} parent=1 // pred_check
      _
    $region19: #{_meta_forward_jit.1} parent=1 // pred_check_branch
      %174 = sbr.rel (0) target = $region21
    $region20: #{_meta_forward_jit.1} parent=1 // pred_region
      _
    $region21: #{_meta_forward_jit.1} parent=1 // pred_fallthru
      _
    %175 = vsyncpa [#allocation3], 1

</llo_original>
